<compile_context>
chip_gen: v7x
topology: tpu7x:2x2x1
jax: 0.10.0
libtpu: 0.0.40
codegen_flags: <defaults>
</compile_context>

<pallas_src>
import jax
import jax.numpy as jnp
import numpy as np
from jax.experimental import pallas as pl
from jax.experimental.pallas import tpu as pltpu


# ------------------------------ fused kernel ------------------------------- #

def _tgcn_cell_kernel(xt_ref, h3_ref, hp_ref, nm1t_ref, dvec_ref,
                      w01_ref, wr1_ref, b1_ref,
                      w02_ref, wr2_ref, b2_ref,
                      o_ref, g2_scr):
    """Whole T-GCN cell for one batch tile (Bt batch elements).

    xt_ref  : (N, Bt)        f32   inputs, node-on-sublane / batch-on-lane (MXU RHS)
    h3_ref  : (Bt, N, H)     f32   hidden, natural node-row view (conv1 MXU LHS)
    hp_ref  : (Bt, N/2, 2H)  f32   hidden, node-paired view (gate / conv2)
    nm1t_ref: (N, N)         bf16  normalized adjacency (transposed), resident
    dvec_ref: (N, 1)         f32   diag(nmat2 - nmat1)  (replaces 2nd (N,N) const)
    w01/wr1/b1 : conv1 projection (GCN 1x1 linear + bias folded in)
    w02/wr2/b2 : conv2 projection
    o_ref   : (Bt, N/2, 2H)  f32   new hidden state, node-major flat order
    g2_scr  : (N, Bt)        f32   scratch for the even/odd node split of g2
    """
    bt = h3_ref.shape[0]
    n, h = h3_ref.shape[1], h3_ref.shape[2]
    half = n // 2

    xt = xt_ref[...]                                        # (N, Bt) f32

    # --- GCN aggregation for the whole batch tile in ONE MXU matmul
    #     g1[n, b] = sum_r nmat1[r, n] * x[b, r]   (bf16 in, f32 accumulate)
    g1t = jnp.dot(nm1t_ref[...], xt.astype(nm1t_ref.dtype),
                  preferred_element_type=jnp.float32)       # (N, Bt)

    # graph_conv2's aggregation differs only on the diagonal (weight_mat += eye
    # in-place side effect):  g2 = g1 + dvec * x.  Split into even/odd nodes
    # (2m / 2m+1) with sublane-strided reads from a tiny VMEM scratch.
    g2_scr[...] = g1t + dvec_ref[...] * xt                  # (N, Bt)
    g2_even = g2_scr[pl.ds(0, half, stride=2), :]           # (N/2, Bt)  nodes 2m
    g2_odd = g2_scr[pl.ds(1, half, stride=2), :]            # (N/2, Bt)  nodes 2m+1

    w01 = w01_ref[...]
    wr1 = wr1_ref[...]
    b1 = b1_ref[...]
    w02 = w02_ref[...]
    wr2 = wr2_ref[...]
    b2 = b2_ref[...]

    for b in range(bt):                                     # unrolled (static Bt)
        h3 = h3_ref[b]                                      # (N, H)    f32
        hp = hp_ref[b]                                      # (N/2, 2H) f32
        g1 = g1t[:, b:b + 1]                                # (N, 1)

        # --- graph_conv1 + sigmoid (bf16 MXU cast happens here, in-kernel)
        pre1 = (g1 * w01
                + jnp.dot(h3.astype(wr1.dtype), wr1,
                          preferred_element_type=jnp.float32)
                + b1)                                       # (N, 2H)
        conc = jax.nn.sigmoid(pre1)

        # torch.chunk(conc_flat, 2, dim=1): r = conc nodes [0, N/2), u = rest.
        # These (N/2, 2H) row slices are exactly the node-paired hidden layout.
        r_pair = conc[:half, :]                             # (N/2, 2H)
        u_pair = conc[half:, :]                             # (N/2, 2H)

        # --- graph_conv2 + tanh in the paired layout.  Two (N/2,H)@(H,H) dots
        # on the lane halves instead of one blockdiag (2H,2H) dot (no 2x MACs).
        rh = (r_pair * hp).astype(wr2.dtype)                # reset-gated hidden
        c_even = jnp.dot(rh[:, :h], wr2, preferred_element_type=jnp.float32)
        c_odd = jnp.dot(rh[:, h:], wr2, preferred_element_type=jnp.float32)
        pre2 = jnp.concatenate(
            [g2_even[:, b:b + 1] * w02 + c_even + b2,
             g2_odd[:, b:b + 1] * w02 + c_odd + b2], axis=1)   # (N/2, 2H)
        c_pair = jnp.tanh(pre2)

        # --- GRU gate; (N/2, 2H) is already the node-major flat layout of new_h
        o_ref[b] = u_pair * hp + (1.0 - u_pair) * c_pair


# --------------------------- constant preparation --------------------------- #

def _normalized_graph_matrix(adj_mat, weight_mat_eff):
    """Dense equivalent of GCNConv's edge_index/degree/norm/scatter pipeline."""
    N = adj_mat.shape[0]
    m = (adj_mat != 0).astype(jnp.float32) + jnp.eye(N, dtype=jnp.float32)
    deg = jnp.sum(m, axis=0)                              # degree of target node
    dis = jnp.where(deg > 0, jax.lax.rsqrt(deg), 0.0)     # deg^-0.5, inf -> 0
    return m * weight_mat_eff * dis[:, None] * dis[None, :]


def init_params(key, hidden_dim):
    H = hidden_dim
    k1, k2 = jax.random.split(key, 2)

    def xavier(k, shape):
        fan_in, fan_out = shape
        a = float(np.sqrt(6.0 / (fan_in + fan_out)))
        return jax.random.uniform(k, shape, jnp.float32, -a, a)

    return dict(
        hidden_dim=H,
        # TGCNGraphConvolution(hidden_dim, 2*hidden_dim, bias=1.0)
        w1=xavier(k1, (H + 1, 2 * H)),
        b1=jnp.full((2 * H,), 1.0, jnp.float32),
        # TGCNGraphConvolution(hidden_dim, hidden_dim, bias=0.0)
        w2=xavier(k2, (H + 1, H)),
        b2=jnp.zeros((H,), jnp.float32),
        # GCNConv Linear(1,1,bias=False) weight (deterministic) and zeroed bias
        gcn1_lin_w=jnp.float32(0.8),
        gcn1_bias=jnp.float32(0.0),
        gcn2_lin_w=jnp.float32(-0.3),
        gcn2_bias=jnp.float32(0.0),
    )


def prepare_tgcn_constants(params, adj_mat, weight_mat, mxu_dtype=jnp.bfloat16):
    """Precompute everything time-invariant (hoist out of a time-step scan)."""
    H = params["hidden_dim"]
    N = adj_mat.shape[0]
    assert N % 2 == 0, "node count must be even (torch.chunk pairing)"
    eye = jnp.eye(N, dtype=jnp.float32)

    # graph_conv1 sees weight_mat + I; graph_conv2 sees weight_mat + 2*I
    # (in-place `weight_mat += eye`).  The difference is purely diagonal:
    # nmat2 = nmat1 + diag(m_ii / deg_i)  -> ship only a (N, 1) vector.
    nmat1 = _normalized_graph_matrix(adj_mat, weight_mat + eye)
    m = (adj_mat != 0).astype(jnp.float32) + eye
    deg = jnp.sum(m, axis=0)
    dvec = jnp.diag(m) * jnp.where(deg > 0, 1.0 / deg, 0.0)

    # Fold the GCN 1x1 linear weight and scalar bias into the projections:
    #   (lin*g + gcn_b)*W[0,:] + h@W[1:,:] + b
    #     = g*(lin*W[0,:]) + h@W[1:,:] + (b + gcn_b*W[0,:])
    w0_1 = params["gcn1_lin_w"] * params["w1"][0:1, :]                 # (1, 2H)
    wr_1 = params["w1"][1:, :].astype(mxu_dtype)                       # (H, 2H)
    b_1 = (params["b1"] + params["gcn1_bias"] * params["w1"][0, :]).reshape(1, 2 * H)

    w0_2 = params["gcn2_lin_w"] * params["w2"][0:1, :]                 # (1, H)
    wr_2 = params["w2"][1:, :].astype(mxu_dtype)                       # (H, H)
    b_2 = (params["b2"] + params["gcn2_bias"] * params["w2"][0, :]).reshape(1, H)

    return dict(
        nmat1_t=nmat1.T.astype(mxu_dtype),   # (N, N) bf16 MXU operand (resident)
        dvec=dvec.reshape(N, 1),             # (N, 1) f32 diagonal correction
        w0_1=w0_1, wr_1=wr_1, b_1=b_1,
        w0_2=w0_2, wr_2=wr_2, b_2=b_2,
    )


# ------------------------------ Pallas wrapper ------------------------------ #

def tgcn_cell_apply(consts, inputs, hidden_state, *, batch_tile=8):
    B, N = inputs.shape
    H = consts["wr_1"].shape[0]
    assert N % 2 == 0 and consts["nmat1_t"].shape == (N, N)
    assert hidden_state.shape == (B, N * H)

    bt = max(1, min(batch_tile, B))
    grid = pl.cdiv(B, bt)
    b_pad = grid * bt

    x = inputs.astype(jnp.float32)
    h = hidden_state.astype(jnp.float32)
    if b_pad != B:
        x = jnp.pad(x, ((0, b_pad - B), (0, 0)))
        h = jnp.pad(h, ((0, b_pad - B), (0, 0)))

    # Per-tile input slab, node-on-sublane / batch-on-lane (MXU RHS); tiny.
    xg = x.reshape(grid, bt, N).transpose(0, 2, 1)               # (G, N, Bt)
    # Two *views* of the SAME flat hidden buffer (free reshapes; the bf16 MXU
    # casts happen inside the kernel, no wrapper-side cast pass / extra buffer).
    h3 = h.reshape(b_pad, N, H)
    hp = h.reshape(b_pad, N // 2, 2 * H)

    def const_spec(shape):
        # grid-invariant constant: resident across the grid, single-buffered
        return pl.BlockSpec(shape, lambda i: (0, 0),
                            pipeline_mode=pl.Buffered(1))

    cost = pl.CostEstimate(
        flops=int(b_pad * (2 * N * N + 6 * N * H * H + 12 * N * H)),
        transcendentals=int(3 * b_pad * N * H),
        bytes_accessed=int(2 * N * N + 12 * b_pad * N * H + 8 * b_pad * N),
    )

    out = pl.pallas_call(
        _tgcn_cell_kernel,
        out_shape=jax.ShapeDtypeStruct((b_pad, N // 2, 2 * H), jnp.float32),
        grid=(grid,),
        in_specs=[
            pl.BlockSpec((None, N, bt), lambda i: (i, 0, 0)),           # x tile
            pl.BlockSpec((bt, N, H), lambda i: (i, 0, 0)),              # h natural
            pl.BlockSpec((bt, N // 2, 2 * H), lambda i: (i, 0, 0)),     # h paired
            const_spec((N, N)),                                         # nmat1_t bf16
            const_spec((N, 1)),                                         # dvec
            const_spec((1, 2 * H)),                                     # w0_1
            const_spec((H, 2 * H)),                                     # wr_1 bf16
            const_spec((1, 2 * H)),                                     # b_1
            const_spec((1, H)),                                         # w0_2
            const_spec((H, H)),                                         # wr_2 bf16
            const_spec((1, H)),                                         # b_2
        ],
        out_specs=pl.BlockSpec((bt, N // 2, 2 * H), lambda i: (i, 0, 0)),
        scratch_shapes=[pltpu.VMEM((N, bt), jnp.float32)],
        compiler_params=pltpu.CompilerParams(
            dimension_semantics=("parallel",),
            vmem_limit_bytes=64 * 1024 * 1024),
        cost_estimate=cost,
        # TODO(synk): in a time-step scan, pass the paired-hidden operand last
        # and set input_output_aliases to write new_h in place.
    )(xg, h3, hp,
      consts["nmat1_t"], consts["dvec"],
      consts["w0_1"], consts["wr_1"], consts["b_1"],
      consts["w0_2"], consts["wr_2"], consts["b_2"])

    # (b_pad, N/2, 2H) is already node-major flat order; reshape is free.
    new_h = out.reshape(b_pad, N * H)[:B]
    return new_h, new_h


def tgcn_cell_forward(params, inputs, hidden_state, adj_mat, weight_mat):
    """Compatibility wrapper (builds the time-invariant constants every call)."""
    consts = prepare_tgcn_constants(params, adj_mat, weight_mat)
    return tgcn_cell_apply(consts, inputs, hidden_state)


# ----------------------------- pure-JAX reference --------------------------- #

def tgcn_cell_reference(params, inputs, hidden_state, adj_mat, weight_mat):
    B, N = inputs.shape
    H = params["hidden_dim"]
    eye = jnp.eye(N, dtype=jnp.float32)
    nmat1 = _normalized_graph_matrix(adj_mat, weight_mat + eye)
    nmat2 = _normalized_graph_matrix(adj_mat, weight_mat + 2.0 * eye)

    def gconv(nmat, h_flat, w, b, lin_w, gcn_b):
        g = lin_w * (inputs @ nmat) + gcn_b                      # (B, N)
        h3 = h_flat.reshape(B, N, H)
        cat = jnp.concatenate([g[..., None], h3], axis=2).reshape(B * N, H + 1)
        out = cat @ w + b
        return out.reshape(B, N * w.shape[1])

    conc = jax.nn.sigmoid(gconv(nmat1, hidden_state, params["w1"], params["b1"],
                                params["gcn1_lin_w"], params["gcn1_bias"]))
    r, u = conc[:, : N * H], conc[:, N * H:]
    c = jnp.tanh(gconv(nmat2, r * hidden_state, params["w2"], params["b2"],
                       params["gcn2_lin_w"], params["gcn2_bias"]))
    new_h = u * hidden_state + (1.0 - u) * c
    return new_h, new_h


# ---------------------------------- main ------------------------------------ #

if __name__ == "__main__":
    B, N, H = 2, 16, 32        # batch, num_nodes (= input_dim), hidden_dim
    key = jax.random.PRNGKey(0)
    kx, kh, ka, kw, kp = jax.random.split(key, 5)

    inputs = jax.random.normal(kx, (B, N), jnp.float32)
    hidden = jax.random.normal(kh, (B, N * H), jnp.float32)
    adj_mat = (jax.random.uniform(ka, (N, N)) > 0.5).astype(jnp.float32)
    weight_mat = jax.random.uniform(kw, (N, N), dtype=jnp.float32)
    params = init_params(kp, H)

    # Hoist the time-invariant graph / weight constants once (as in a scan).
    consts = prepare_tgcn_constants(params, adj_mat, weight_mat)
    apply_fn = jax.jit(tgcn_cell_apply)

    new_h, _ = apply_fn(consts, inputs, hidden)
    new_h = jax.block_until_ready(new_h)

    ref, _ = tgcn_cell_reference(params, inputs, hidden, adj_mat, weight_mat)
    assert new_h.shape == (B, N * H)
    np.testing.assert_allclose(np.asarray(new_h), np.asarray(ref),
                               rtol=5e-2, atol=5e-2)
    print("KERNEL_OK")
</pallas_src>

<mosaic_0001>
module attributes {stable_mosaic.version = 11 : i64} {
  func.func @_tgcn_cell_kernel(%arg0: i32, %arg1: memref<1x16x2xf32, #tpu.memory_space<vmem>>, %arg2: memref<2x16x32xf32, #tpu.memory_space<vmem>>, %arg3: memref<2x8x64xf32, #tpu.memory_space<vmem>>, %arg4: memref<16x16xbf16, #tpu.memory_space<vmem>>, %arg5: memref<16x1xf32, #tpu.memory_space<vmem>>, %arg6: memref<1x64xf32, #tpu.memory_space<vmem>>, %arg7: memref<32x64xbf16, #tpu.memory_space<vmem>>, %arg8: memref<1x64xf32, #tpu.memory_space<vmem>>, %arg9: memref<1x32xf32, #tpu.memory_space<vmem>>, %arg10: memref<32x32xbf16, #tpu.memory_space<vmem>>, %arg11: memref<1x32xf32, #tpu.memory_space<vmem>>, %arg12: memref<2x8x64xf32, #tpu.memory_space<vmem>>, %arg13: memref<16x2xf32, #tpu.memory_space<vmem>>) attributes {dimension_semantics = [#tpu.dimension_semantics<parallel>], iteration_bounds = array<i64: 1>, scalar_prefetch = 0 : i64, scratch_operands = 1 : i64, tpu.core_type = #tpu.core_type<tc>, window_params = [{transform_indices = @transform_0, window_bounds = array<i64: 1, 16, 2>}, {transform_indices = @transform_1, window_bounds = array<i64: 2, 16, 32>}, {transform_indices = @transform_2, window_bounds = array<i64: 2, 8, 64>}, {pipeline_mode = #tpu.pipeline_mode<synchronous>, transform_indices = @transform_3, window_bounds = array<i64: 16, 16>}, {pipeline_mode = #tpu.pipeline_mode<synchronous>, transform_indices = @transform_4, window_bounds = array<i64: 16, 1>}, {pipeline_mode = #tpu.pipeline_mode<synchronous>, transform_indices = @transform_5, window_bounds = array<i64: 1, 64>}, {pipeline_mode = #tpu.pipeline_mode<synchronous>, transform_indices = @transform_6, window_bounds = array<i64: 32, 64>}, {pipeline_mode = #tpu.pipeline_mode<synchronous>, transform_indices = @transform_7, window_bounds = array<i64: 1, 64>}, {pipeline_mode = #tpu.pipeline_mode<synchronous>, transform_indices = @transform_8, window_bounds = array<i64: 1, 32>}, {pipeline_mode = #tpu.pipeline_mode<synchronous>, transform_indices = @transform_9, window_bounds = array<i64: 32, 32>}, {pipeline_mode = #tpu.pipeline_mode<synchronous>, transform_indices = @transform_10, window_bounds = array<i64: 1, 32>}, {transform_indices = @transform_11, window_bounds = array<i64: 2, 8, 64>}]} {
    %c0 = arith.constant 0 : index
    %c0_0 = arith.constant 0 : index
    %c0_1 = arith.constant 0 : index
    %0 = vector.load %arg1[%c0, %c0_0, %c0_1] : memref<1x16x2xf32, #tpu.memory_space<vmem>>, vector<1x16x2xf32>
    %1 = vector.shape_cast %0 : vector<1x16x2xf32> to vector<16x2xf32>
    %c0_2 = arith.constant 0 : index
    %c0_3 = arith.constant 0 : index
    %2 = vector.load %arg4[%c0_2, %c0_3] : memref<16x16xbf16, #tpu.memory_space<vmem>>, vector<16x16xbf16>
    %3 = arith.truncf %1 : vector<16x2xf32> to vector<16x2xbf16>
    %cst = arith.constant dense<0.000000e+00> : vector<16x2xf32>
    %4 = tpu.matmul %2, %3, %cst {dimension_numbers = #tpu.dot_dimension_numbers<[1], [0], [0], [1], [0, 0, 1, 1], [], []>} : vector<16x16xbf16>, vector<16x2xbf16>, vector<16x2xf32> -> vector<16x2xf32>
    %c0_4 = arith.constant 0 : index
    %c0_5 = arith.constant 0 : index
    %5 = vector.load %arg5[%c0_4, %c0_5] : memref<16x1xf32, #tpu.memory_space<vmem>>, vector<16x1xf32>
    %6 = vector.broadcast %5 : vector<16x1xf32> to vector<16x2xf32>
    %7 = arith.mulf %6, %1 : vector<16x2xf32>
    %8 = arith.addf %4, %7 : vector<16x2xf32>
    %c0_6 = arith.constant 0 : index
    %c0_7 = arith.constant 0 : index
    %9 = vector.load %arg13[%c0_6, %c0_7] : memref<16x2xf32, #tpu.memory_space<vmem>>, vector<16x2xf32>
    tpu.vector_store %arg13[%c0_6, %c0_7], %8 {strides = array<i32>} : memref<16x2xf32, #tpu.memory_space<vmem>>, vector<16x2xf32>,
    %c0_8 = arith.constant 0 : index
    %c0_9 = arith.constant 0 : index
    %10 = tpu.strided_load %arg13[%c0_8, %c0_9] {strides = array<i32: 2, 1>} : memref<16x2xf32, #tpu.memory_space<vmem>>, vector<8x2xf32>
    %c1 = arith.constant 1 : index
    %c0_10 = arith.constant 0 : index
    %11 = tpu.strided_load %arg13[%c1, %c0_10] {strides = array<i32: 2, 1>} : memref<16x2xf32, #tpu.memory_space<vmem>>, vector<8x2xf32>
    %c0_11 = arith.constant 0 : index
    %c0_12 = arith.constant 0 : index
    %12 = vector.load %arg6[%c0_11, %c0_12] : memref<1x64xf32, #tpu.memory_space<vmem>>, vector<1x64xf32>
    %c0_13 = arith.constant 0 : index
    %c0_14 = arith.constant 0 : index
    %13 = vector.load %arg7[%c0_13, %c0_14] : memref<32x64xbf16, #tpu.memory_space<vmem>>, vector<32x64xbf16>
    %c0_15 = arith.constant 0 : index
    %c0_16 = arith.constant 0 : index
    %14 = vector.load %arg8[%c0_15, %c0_16] : memref<1x64xf32, #tpu.memory_space<vmem>>, vector<1x64xf32>
    %c0_17 = arith.constant 0 : index
    %c0_18 = arith.constant 0 : index
    %15 = vector.load %arg9[%c0_17, %c0_18] : memref<1x32xf32, #tpu.memory_space<vmem>>, vector<1x32xf32>
    %c0_19 = arith.constant 0 : index
    %c0_20 = arith.constant 0 : index
    %16 = vector.load %arg10[%c0_19, %c0_20] : memref<32x32xbf16, #tpu.memory_space<vmem>>, vector<32x32xbf16>
    %c0_21 = arith.constant 0 : index
    %c0_22 = arith.constant 0 : index
    %17 = vector.load %arg11[%c0_21, %c0_22] : memref<1x32xf32, #tpu.memory_space<vmem>>, vector<1x32xf32>
    %c0_23 = arith.constant 0 : index
    %c0_24 = arith.constant 0 : index
    %c0_25 = arith.constant 0 : index
    %18 = vector.load %arg2[%c0_23, %c0_24, %c0_25] : memref<2x16x32xf32, #tpu.memory_space<vmem>>, vector<1x16x32xf32>
    %19 = vector.shape_cast %18 : vector<1x16x32xf32> to vector<16x32xf32>
    %c0_26 = arith.constant 0 : index
    %c0_27 = arith.constant 0 : index
    %c0_28 = arith.constant 0 : index
    %20 = vector.load %arg3[%c0_26, %c0_27, %c0_28] : memref<2x8x64xf32, #tpu.memory_space<vmem>>, vector<1x8x64xf32>
    %21 = vector.shape_cast %20 : vector<1x8x64xf32> to vector<8x64xf32>
    %22 = vector.extract_strided_slice %4 {offsets = [0, 0], sizes = [16, 1], strides = [1, 1]} : vector<16x2xf32> to vector<16x1xf32>
    %23 = vector.broadcast %22 : vector<16x1xf32> to vector<16x64xf32>
    %24 = vector.broadcast %12 : vector<1x64xf32> to vector<16x64xf32>
    %25 = arith.mulf %23, %24 : vector<16x64xf32>
    %26 = arith.truncf %19 : vector<16x32xf32> to vector<16x32xbf16>
    %cst_29 = arith.constant dense<0.000000e+00> : vector<16x64xf32>
    %27 = tpu.matmul %26, %13, %cst_29 {dimension_numbers = #tpu.dot_dimension_numbers<[1], [0], [0], [1], [0, 0, 1, 1], [], []>} : vector<16x32xbf16>, vector<32x64xbf16>, vector<16x64xf32> -> vector<16x64xf32>
    %28 = arith.addf %25, %27 : vector<16x64xf32>
    %29 = vector.broadcast %14 : vector<1x64xf32> to vector<16x64xf32>
    %30 = arith.addf %28, %29 : vector<16x64xf32>
    %31 = arith.negf %30 : vector<16x64xf32>
    %32 = math.exp %31 : vector<16x64xf32>
    %cst_30 = arith.constant 1.000000e+00 : f32
    %33 = vector.broadcast %cst_30 : f32 to vector<16x64xf32>
    %34 = arith.addf %33, %32 : vector<16x64xf32>
    %35 = arith.divf %33, %34 : vector<16x64xf32>
    %36 = vector.extract_strided_slice %35 {offsets = [0, 0], sizes = [8, 64], strides = [1, 1]} : vector<16x64xf32> to vector<8x64xf32>
    %37 = vector.extract_strided_slice %35 {offsets = [8, 0], sizes = [8, 64], strides = [1, 1]} : vector<16x64xf32> to vector<8x64xf32>
    %38 = arith.mulf %36, %21 : vector<8x64xf32>
    %39 = arith.truncf %38 : vector<8x64xf32> to vector<8x64xbf16>
    %40 = vector.extract_strided_slice %39 {offsets = [0, 0], sizes = [8, 32], strides = [1, 1]} : vector<8x64xbf16> to vector<8x32xbf16>
    %cst_31 = arith.constant dense<0.000000e+00> : vector<8x32xf32>
    %41 = tpu.matmul %40, %16, %cst_31 {dimension_numbers = #tpu.dot_dimension_numbers<[1], [0], [0], [1], [0, 0, 1, 1], [], []>} : vector<8x32xbf16>, vector<32x32xbf16>, vector<8x32xf32> -> vector<8x32xf32>
    %42 = vector.extract_strided_slice %39 {offsets = [0, 32], sizes = [8, 32], strides = [1, 1]} : vector<8x64xbf16> to vector<8x32xbf16>
    %cst_32 = arith.constant dense<0.000000e+00> : vector<8x32xf32>
    %43 = tpu.matmul %42, %16, %cst_32 {dimension_numbers = #tpu.dot_dimension_numbers<[1], [0], [0], [1], [0, 0, 1, 1], [], []>} : vector<8x32xbf16>, vector<32x32xbf16>, vector<8x32xf32> -> vector<8x32xf32>
    %44 = vector.extract_strided_slice %10 {offsets = [0, 0], sizes = [8, 1], strides = [1, 1]} : vector<8x2xf32> to vector<8x1xf32>
    %45 = vector.broadcast %44 : vector<8x1xf32> to vector<8x32xf32>
    %46 = vector.broadcast %15 : vector<1x32xf32> to vector<8x32xf32>
    %47 = arith.mulf %45, %46 : vector<8x32xf32>
    %48 = arith.addf %47, %41 : vector<8x32xf32>
    %49 = vector.broadcast %17 : vector<1x32xf32> to vector<8x32xf32>
    %50 = arith.addf %48, %49 : vector<8x32xf32>
    %51 = vector.extract_strided_slice %11 {offsets = [0, 0], sizes = [8, 1], strides = [1, 1]} : vector<8x2xf32> to vector<8x1xf32>
    %52 = vector.broadcast %51 : vector<8x1xf32> to vector<8x32xf32>
    %53 = vector.broadcast %15 : vector<1x32xf32> to vector<8x32xf32>
    %54 = arith.mulf %52, %53 : vector<8x32xf32>
    %55 = arith.addf %54, %43 : vector<8x32xf32>
    %56 = vector.broadcast %17 : vector<1x32xf32> to vector<8x32xf32>
    %57 = arith.addf %55, %56 : vector<8x32xf32>
    %58 = tpu.concatenate %50, %57 in 1 : vector<8x32xf32>, vector<8x32xf32> -> vector<8x64xf32>
    %59 = math.tanh %58 : vector<8x64xf32>
    %60 = arith.mulf %37, %21 : vector<8x64xf32>
    %cst_33 = arith.constant 1.000000e+00 : f32
    %61 = vector.broadcast %cst_33 : f32 to vector<8x64xf32>
    %62 = arith.subf %61, %37 : vector<8x64xf32>
    %63 = arith.mulf %62, %59 : vector<8x64xf32>
    %64 = arith.addf %60, %63 : vector<8x64xf32>
    %c0_34 = arith.constant 0 : index
    %c0_35 = arith.constant 0 : index
    %c0_36 = arith.constant 0 : index
    %65 = vector.load %arg12[%c0_34, %c0_35, %c0_36] : memref<2x8x64xf32, #tpu.memory_space<vmem>>, vector<1x8x64xf32>
    %66 = vector.shape_cast %65 : vector<1x8x64xf32> to vector<8x64xf32>
    %67 = vector.shape_cast %64 : vector<8x64xf32> to vector<1x8x64xf32>
    tpu.vector_store %arg12[%c0_34, %c0_35, %c0_36], %67 {strides = array<i32>} : memref<2x8x64xf32, #tpu.memory_space<vmem>>, vector<1x8x64xf32>,
    %c1_37 = arith.constant 1 : index
    %c0_38 = arith.constant 0 : index
    %c0_39 = arith.constant 0 : index
    %68 = vector.load %arg2[%c1_37, %c0_38, %c0_39] : memref<2x16x32xf32, #tpu.memory_space<vmem>>, vector<1x16x32xf32>
    %69 = vector.shape_cast %68 : vector<1x16x32xf32> to vector<16x32xf32>
    %c1_40 = arith.constant 1 : index
    %c0_41 = arith.constant 0 : index
    %c0_42 = arith.constant 0 : index
    %70 = vector.load %arg3[%c1_40, %c0_41, %c0_42] : memref<2x8x64xf32, #tpu.memory_space<vmem>>, vector<1x8x64xf32>
    %71 = vector.shape_cast %70 : vector<1x8x64xf32> to vector<8x64xf32>
    %72 = vector.extract_strided_slice %4 {offsets = [0, 1], sizes = [16, 1], strides = [1, 1]} : vector<16x2xf32> to vector<16x1xf32>
    %73 = vector.broadcast %72 : vector<16x1xf32> to vector<16x64xf32>
    %74 = vector.broadcast %12 : vector<1x64xf32> to vector<16x64xf32>
    %75 = arith.mulf %73, %74 : vector<16x64xf32>
    %76 = arith.truncf %69 : vector<16x32xf32> to vector<16x32xbf16>
    %cst_43 = arith.constant dense<0.000000e+00> : vector<16x64xf32>
    %77 = tpu.matmul %76, %13, %cst_43 {dimension_numbers = #tpu.dot_dimension_numbers<[1], [0], [0], [1], [0, 0, 1, 1], [], []>} : vector<16x32xbf16>, vector<32x64xbf16>, vector<16x64xf32> -> vector<16x64xf32>
    %78 = arith.addf %75, %77 : vector<16x64xf32>
    %79 = vector.broadcast %14 : vector<1x64xf32> to vector<16x64xf32>
    %80 = arith.addf %78, %79 : vector<16x64xf32>
    %81 = arith.negf %80 : vector<16x64xf32>
    %82 = math.exp %81 : vector<16x64xf32>
    %cst_44 = arith.constant 1.000000e+00 : f32
    %83 = vector.broadcast %cst_44 : f32 to vector<16x64xf32>
    %84 = arith.addf %83, %82 : vector<16x64xf32>
    %85 = arith.divf %83, %84 : vector<16x64xf32>
    %86 = vector.extract_strided_slice %85 {offsets = [0, 0], sizes = [8, 64], strides = [1, 1]} : vector<16x64xf32> to vector<8x64xf32>
    %87 = vector.extract_strided_slice %85 {offsets = [8, 0], sizes = [8, 64], strides = [1, 1]} : vector<16x64xf32> to vector<8x64xf32>
    %88 = arith.mulf %86, %71 : vector<8x64xf32>
    %89 = arith.truncf %88 : vector<8x64xf32> to vector<8x64xbf16>
    %90 = vector.extract_strided_slice %89 {offsets = [0, 0], sizes = [8, 32], strides = [1, 1]} : vector<8x64xbf16> to vector<8x32xbf16>
    %cst_45 = arith.constant dense<0.000000e+00> : vector<8x32xf32>
    %91 = tpu.matmul %90, %16, %cst_45 {dimension_numbers = #tpu.dot_dimension_numbers<[1], [0], [0], [1], [0, 0, 1, 1], [], []>} : vector<8x32xbf16>, vector<32x32xbf16>, vector<8x32xf32> -> vector<8x32xf32>
    %92 = vector.extract_strided_slice %89 {offsets = [0, 32], sizes = [8, 32], strides = [1, 1]} : vector<8x64xbf16> to vector<8x32xbf16>
    %cst_46 = arith.constant dense<0.000000e+00> : vector<8x32xf32>
    %93 = tpu.matmul %92, %16, %cst_46 {dimension_numbers = #tpu.dot_dimension_numbers<[1], [0], [0], [1], [0, 0, 1, 1], [], []>} : vector<8x32xbf16>, vector<32x32xbf16>, vector<8x32xf32> -> vector<8x32xf32>
    %94 = vector.extract_strided_slice %10 {offsets = [0, 1], sizes = [8, 1], strides = [1, 1]} : vector<8x2xf32> to vector<8x1xf32>
    %95 = vector.broadcast %94 : vector<8x1xf32> to vector<8x32xf32>
    %96 = vector.broadcast %15 : vector<1x32xf32> to vector<8x32xf32>
    %97 = arith.mulf %95, %96 : vector<8x32xf32>
    %98 = arith.addf %97, %91 : vector<8x32xf32>
    %99 = vector.broadcast %17 : vector<1x32xf32> to vector<8x32xf32>
    %100 = arith.addf %98, %99 : vector<8x32xf32>
    %101 = vector.extract_strided_slice %11 {offsets = [0, 1], sizes = [8, 1], strides = [1, 1]} : vector<8x2xf32> to vector<8x1xf32>
    %102 = vector.broadcast %101 : vector<8x1xf32> to vector<8x32xf32>
    %103 = vector.broadcast %15 : vector<1x32xf32> to vector<8x32xf32>
    %104 = arith.mulf %102, %103 : vector<8x32xf32>
    %105 = arith.addf %104, %93 : vector<8x32xf32>
    %106 = vector.broadcast %17 : vector<1x32xf32> to vector<8x32xf32>
    %107 = arith.addf %105, %106 : vector<8x32xf32>
    %108 = tpu.concatenate %100, %107 in 1 : vector<8x32xf32>, vector<8x32xf32> -> vector<8x64xf32>
    %109 = math.tanh %108 : vector<8x64xf32>
    %110 = arith.mulf %87, %71 : vector<8x64xf32>
    %cst_47 = arith.constant 1.000000e+00 : f32
    %111 = vector.broadcast %cst_47 : f32 to vector<8x64xf32>
    %112 = arith.subf %111, %87 : vector<8x64xf32>
    %113 = arith.mulf %112, %109 : vector<8x64xf32>
    %114 = arith.addf %110, %113 : vector<8x64xf32>
    %c1_48 = arith.constant 1 : index
    %c0_49 = arith.constant 0 : index
    %c0_50 = arith.constant 0 : index
    %115 = vector.load %arg12[%c1_48, %c0_49, %c0_50] : memref<2x8x64xf32, #tpu.memory_space<vmem>>, vector<1x8x64xf32>
    %116 = vector.shape_cast %115 : vector<1x8x64xf32> to vector<8x64xf32>
    %117 = vector.shape_cast %114 : vector<8x64xf32> to vector<1x8x64xf32>
    tpu.vector_store %arg12[%c1_48, %c0_49, %c0_50], %117 {strides = array<i32>} : memref<2x8x64xf32, #tpu.memory_space<vmem>>, vector<1x8x64xf32>,
    return
  }
  func.func @transform_0(%arg0: i32) -> (i32, i32, i32) {
    %c0_i32 = arith.constant 0 : i32
    %c0_i32_0 = arith.constant 0 : i32
    %c0_i32_1 = arith.constant 0 : i32
    return %arg0, %c0_i32, %c0_i32_0 : i32, i32, i32
  }
  func.func @transform_1(%arg0: i32) -> (i32, i32, i32) {
    %c0_i32 = arith.constant 0 : i32
    %c0_i32_0 = arith.constant 0 : i32
    %c0_i32_1 = arith.constant 0 : i32
    return %arg0, %c0_i32, %c0_i32_0 : i32, i32, i32
  }
  func.func @transform_2(%arg0: i32) -> (i32, i32, i32) {
    %c0_i32 = arith.constant 0 : i32
    %c0_i32_0 = arith.constant 0 : i32
    %c0_i32_1 = arith.constant 0 : i32
    return %arg0, %c0_i32, %c0_i32_0 : i32, i32, i32
  }
  func.func @transform_3(%arg0: i32) -> (i32, i32) {
    %c0_i32 = arith.constant 0 : i32
    %c0_i32_0 = arith.constant 0 : i32
    %c0_i32_1 = arith.constant 0 : i32
    return %c0_i32, %c0_i32_0 : i32, i32
  }
  func.func @transform_4(%arg0: i32) -> (i32, i32) {
    %c0_i32 = arith.constant 0 : i32
    %c0_i32_0 = arith.constant 0 : i32
    %c0_i32_1 = arith.constant 0 : i32
    return %c0_i32, %c0_i32_0 : i32, i32
  }
  func.func @transform_5(%arg0: i32) -> (i32, i32) {
    %c0_i32 = arith.constant 0 : i32
    %c0_i32_0 = arith.constant 0 : i32
    %c0_i32_1 = arith.constant 0 : i32
    return %c0_i32, %c0_i32_0 : i32, i32
  }
  func.func @transform_6(%arg0: i32) -> (i32, i32) {
    %c0_i32 = arith.constant 0 : i32
    %c0_i32_0 = arith.constant 0 : i32
    %c0_i32_1 = arith.constant 0 : i32
    return %c0_i32, %c0_i32_0 : i32, i32
  }
  func.func @transform_7(%arg0: i32) -> (i32, i32) {
    %c0_i32 = arith.constant 0 : i32
    %c0_i32_0 = arith.constant 0 : i32
    %c0_i32_1 = arith.constant 0 : i32
    return %c0_i32, %c0_i32_0 : i32, i32
  }
  func.func @transform_8(%arg0: i32) -> (i32, i32) {
    %c0_i32 = arith.constant 0 : i32
    %c0_i32_0 = arith.constant 0 : i32
    %c0_i32_1 = arith.constant 0 : i32
    return %c0_i32, %c0_i32_0 : i32, i32
  }
  func.func @transform_9(%arg0: i32) -> (i32, i32) {
    %c0_i32 = arith.constant 0 : i32
    %c0_i32_0 = arith.constant 0 : i32
    %c0_i32_1 = arith.constant 0 : i32
    return %c0_i32, %c0_i32_0 : i32, i32
  }
  func.func @transform_10(%arg0: i32) -> (i32, i32) {
    %c0_i32 = arith.constant 0 : i32
    %c0_i32_0 = arith.constant 0 : i32
    %c0_i32_1 = arith.constant 0 : i32
    return %c0_i32, %c0_i32_0 : i32, i32
  }
  func.func @transform_11(%arg0: i32) -> (i32, i32, i32) {
    %c0_i32 = arith.constant 0 : i32
    %c0_i32_0 = arith.constant 0 : i32
    %c0_i32_1 = arith.constant 0 : i32
    return %arg0, %c0_i32, %c0_i32_0 : i32, i32, i32
  }
}

</mosaic_0001>

<llo_original>
// kernel: tgcn_cell_apply.1
$region0: #{tgcn_cell_apply.1}
  #allocation0 [shape = 'u32[]', space=smem, size = 0x4, offset = 0x4, fixed_abs, tag = 'smem constant byte address 0x4 - core index']
  #allocation1 [shape = 'u32[144,128]{1,0:T(1,128)}', space=vmem, size = 0x12000, scoped, tag = 'internal scratch']
  #allocation2 [shape = 'f32[16,2]{1,0:T(8,128)}', space=vmem, size = 0x2000, scoped, tag = 'scratch operand']
  %s0 = inlined_call_operand.hbm [shape: f32[1,16,2], index: 0, kind: input, shape index: {}]
  %s1 = inlined_call_operand.hbm [shape: f32[2,16,32], index: 1, kind: input, shape index: {}]
  %s2 = inlined_call_operand.hbm [shape: f32[2,8,64], index: 2, kind: input, shape index: {}]
  %s3 = inlined_call_operand.hbm [shape: bf16[16,16], index: 3, kind: input, shape index: {}]
  %s4 = inlined_call_operand.hbm [shape: f32[16,1], index: 4, kind: input, shape index: {}]
  %s5 = inlined_call_operand.hbm [shape: f32[1,64], index: 5, kind: input, shape index: {}]
  %s6 = inlined_call_operand.hbm [shape: bf16[32,64], index: 6, kind: input, shape index: {}]
  %s7 = inlined_call_operand.hbm [shape: f32[1,64], index: 7, kind: input, shape index: {}]
  %s8 = inlined_call_operand.hbm [shape: f32[1,32], index: 8, kind: input, shape index: {}]
  %s9 = inlined_call_operand.hbm [shape: bf16[32,32], index: 9, kind: input, shape index: {}]
  %s10 = inlined_call_operand.hbm [shape: f32[1,32], index: 10, kind: input, shape index: {}]
  %s11 = inlined_call_operand.hbm [shape: f32[2,8,64], index: 11, kind: output, shape index: {}]
  %s12 = sld [smem:[#allocation0]]
  $region98: #{tgcn_cell_apply.1} parent=0
    _
  %s14 = ssub.s32 1, %s12
  %s15 = scalar_select 0, %s14, %s12
  $region1: #{tgcn_cell_apply.1} parent=0
    #allocation3 [shape = 'u8[8192]{0}', space=vmem, size = 0x2000, scoped, tag = 'input window, operand 0, single buffered']
    #allocation4 [shape = 's32[1]{0}', space=sflag, size = 0x4, scoped, tag = 'scoped memory for tgcn_cell_apply.1']
    #allocation5 [shape = 's32[1]{0}', space=sflag, size = 0x4, scoped, tag = 'scoped memory for tgcn_cell_apply.1']
    #allocation6 [shape = 'u8[16384]{0}', space=vmem, size = 0x4000, scoped, tag = 'input window, operand 1, single buffered']
    #allocation7 [shape = 's32[1]{0}', space=sflag, size = 0x4, scoped, tag = 'scoped memory for tgcn_cell_apply.1']
    #allocation8 [shape = 'u8[8192]{0}', space=vmem, size = 0x2000, scoped, tag = 'input window, operand 2, single buffered']
    #allocation9 [shape = 'u8[4096]{0}', space=vmem, size = 0x1000, scoped, tag = 'input window, operand 3, single buffered']
    #allocation10 [shape = 's32[1]{0}', space=sflag, size = 0x4, scoped, tag = 'scoped memory for tgcn_cell_apply.1']
    #allocation11 [shape = 'u8[8192]{0}', space=vmem, size = 0x2000, scoped, tag = 'input window, operand 4, single buffered']
    #allocation12 [shape = 'u8[512]{0}', space=vmem, size = 0x400, scoped, tag = 'input window, operand 5, single buffered']
    #allocation13 [shape = 's32[1]{0}', space=sflag, size = 0x4, scoped, tag = 'scoped memory for tgcn_cell_apply.1']
    #allocation14 [shape = 'u8[8192]{0}', space=vmem, size = 0x2000, scoped, tag = 'input window, operand 6, single buffered']
    #allocation15 [shape = 'u8[512]{0}', space=vmem, size = 0x400, scoped, tag = 'input window, operand 7, single buffered']
    #allocation16 [shape = 's32[1]{0}', space=sflag, size = 0x4, scoped, tag = 'scoped memory for tgcn_cell_apply.1']
    #allocation17 [shape = 'u8[512]{0}', space=vmem, size = 0x400, scoped, tag = 'input window, operand 8, single buffered']
    #allocation18 [shape = 'u8[8192]{0}', space=vmem, size = 0x2000, scoped, tag = 'input window, operand 9, single buffered']
    #allocation19 [shape = 's32[1]{0}', space=sflag, size = 0x4, scoped, tag = 'scoped memory for tgcn_cell_apply.1']
    #allocation20 [shape = 'u8[512]{0}', space=vmem, size = 0x400, scoped, tag = 'input window, operand 10, single buffered']
    #allocation21 [shape = 'u8[8192]{0}', space=vmem, size = 0x2000, scoped, tag = 'output window, operand 0, single buffered']
    %16 = vsyncpa [#allocation4], 0
    %17 = vsyncpa [#allocation7], 0
    %18 = vsyncpa [#allocation10], 0
    %19 = vsyncpa [#allocation13], 0
    %20 = vsyncpa [#allocation16], 0
    %21 = vsyncpa [#allocation19], 0
    %22 = vsyncpa [#allocation5], 0
    // Predicated region
    $region2: #{tgcn_cell_apply.1} parent=1 // pred_check
      _
    $region3: #{tgcn_cell_apply.1} parent=1 // pred_check_branch
      %24 = sbr.rel (0) target = $region5
    $region4: #{tgcn_cell_apply.1} parent=1 // pred_region
      %s26 = ssub.s32 256, 256
      %27 = vsyncadd [#allocation4], %s26
      %s28 = sshll.u32 [#allocation3], 4
      %s29 = int_to_ptr.vmem [resolvable:$true] %s28
      %34 = dma.hbm_to_vmem [thread:$0]  %s0, 256, %s29, [#allocation4], 128, 128, 8
    $region5: #{tgcn_cell_apply.1} parent=1 // pred_fallthru
      _
    // Predicated region
    $region6: #{tgcn_cell_apply.1} parent=1 // pred_check
      _
    $region7: #{tgcn_cell_apply.1} parent=1 // pred_check_branch
      %36 = sbr.rel (0) target = $region9
    $region8: #{tgcn_cell_apply.1} parent=1 // pred_region
      %s38 = ssub.s32 512, 512
      %39 = vsyncadd [#allocation7], %s38
      %s40 = sshll.u32 [#allocation6], 4
      %s41 = int_to_ptr.vmem [resolvable:$true] %s40
      %46 = dma.hbm_to_vmem [thread:$0]  %s1, 512, %s41, [#allocation7], 128, 128, 8
    $region9: #{tgcn_cell_apply.1} parent=1 // pred_fallthru
      _
    // Predicated region
    $region10: #{tgcn_cell_apply.1} parent=1 // pred_check
      _
    $region11: #{tgcn_cell_apply.1} parent=1 // pred_check_branch
      %48 = sbr.rel (0) target = $region13
    $region12: #{tgcn_cell_apply.1} parent=1 // pred_region
      %s50 = ssub.s32 256, 256
      %51 = vsyncadd [#allocation7], %s50
      %s52 = sshll.u32 [#allocation8], 4
      %s53 = int_to_ptr.vmem [resolvable:$true] %s52
      %58 = dma.hbm_to_vmem [thread:$0]  %s2, 256, %s53, [#allocation7], 128, 128, 8
    $region13: #{tgcn_cell_apply.1} parent=1 // pred_fallthru
      _
    // Predicated region
    $region14: #{tgcn_cell_apply.1} parent=1 // pred_check
      _
    $region15: #{tgcn_cell_apply.1} parent=1 // pred_check_branch
      %60 = sbr.rel (0) target = $region17
    $region16: #{tgcn_cell_apply.1} parent=1 // pred_region
      %s62 = ssub.s32 128, 128
      %63 = vsyncadd [#allocation10], %s62
      %s64 = sshll.u32 [#allocation9], 4
      %s65 = int_to_ptr.vmem [resolvable:$true] %s64
      %70 = dma.hbm_to_vmem [thread:$0]  %s3, 128, %s65, [#allocation10], 64, 64, 4
    $region17: #{tgcn_cell_apply.1} parent=1 // pred_fallthru
      _
    // Predicated region
    $region18: #{tgcn_cell_apply.1} parent=1 // pred_check
      _
    $region19: #{tgcn_cell_apply.1} parent=1 // pred_check_branch
      %72 = sbr.rel (0) target = $region21
    $region20: #{tgcn_cell_apply.1} parent=1 // pred_region
      %s74 = ssub.s32 256, 256
      %75 = vsyncadd [#allocation10], %s74
      %s76 = sshll.u32 [#allocation11], 4
      %s77 = int_to_ptr.vmem [resolvable:$true] %s76
      %82 = dma.hbm_to_vmem [thread:$0]  %s4, 256, %s77, [#allocation10], 128, 128, 8
    $region21: #{tgcn_cell_apply.1} parent=1 // pred_fallthru
      _
    // Predicated region
    $region22: #{tgcn_cell_apply.1} parent=1 // pred_check
      _
    $region23: #{tgcn_cell_apply.1} parent=1 // pred_check_branch
      %84 = sbr.rel (0) target = $region25
    $region24: #{tgcn_cell_apply.1} parent=1 // pred_region
      %s86 = ssub.s32 16, 16
      %87 = vsyncadd [#allocation13], %s86
      %s89 = sshll.u32 [#allocation12], 4
      %s90 = int_to_ptr.vmem [resolvable:$true] %s89
      %92 = dma.hbm_to_vmem [thread:$0]  %s5, 16, %s90, [#allocation13]
    $region25: #{tgcn_cell_apply.1} parent=1 // pred_fallthru
      _
    // Predicated region
    $region26: #{tgcn_cell_apply.1} parent=1 // pred_check
      _
    $region27: #{tgcn_cell_apply.1} parent=1 // pred_check_branch
      %94 = sbr.rel (0) target = $region29
    $region28: #{tgcn_cell_apply.1} parent=1 // pred_region
      %s96 = ssub.s32 256, 256
      %97 = vsyncadd [#allocation13], %s96
      %s98 = sshll.u32 [#allocation14], 4
      %s99 = int_to_ptr.vmem [resolvable:$true] %s98
      %104 = dma.hbm_to_vmem [thread:$0]  %s6, 256, %s99, [#allocation13], 64, 64, 4
    $region29: #{tgcn_cell_apply.1} parent=1 // pred_fallthru
      _
    // Predicated region
    $region30: #{tgcn_cell_apply.1} parent=1 // pred_check
      _
    $region31: #{tgcn_cell_apply.1} parent=1 // pred_check_branch
      %106 = sbr.rel (0) target = $region33
    $region32: #{tgcn_cell_apply.1} parent=1 // pred_region
      %s108 = ssub.s32 16, 16
      %109 = vsyncadd [#allocation16], %s108
      %s111 = sshll.u32 [#allocation15], 4
      %s112 = int_to_ptr.vmem [resolvable:$true] %s111
      %114 = dma.hbm_to_vmem [thread:$0]  %s7, 16, %s112, [#allocation16]
    $region33: #{tgcn_cell_apply.1} parent=1 // pred_fallthru
      _
    // Predicated region
    $region34: #{tgcn_cell_apply.1} parent=1 // pred_check
      _
    $region35: #{tgcn_cell_apply.1} parent=1 // pred_check_branch
      %116 = sbr.rel (0) target = $region37
    $region36: #{tgcn_cell_apply.1} parent=1 // pred_region
      %s118 = ssub.s32 16, 16
      %119 = vsyncadd [#allocation16], %s118
      %s121 = sshll.u32 [#allocation17], 4
      %s122 = int_to_ptr.vmem [resolvable:$true] %s121
      %124 = dma.hbm_to_vmem [thread:$0]  %s8, 16, %s122, [#allocation16]
    $region37: #{tgcn_cell_apply.1} parent=1 // pred_fallthru
      _
    // Predicated region
    $region38: #{tgcn_cell_apply.1} parent=1 // pred_check
      _
    $region39: #{tgcn_cell_apply.1} parent=1 // pred_check_branch
      %126 = sbr.rel (0) target = $region41
    $region40: #{tgcn_cell_apply.1} parent=1 // pred_region
      %s128 = ssub.s32 256, 256
      %129 = vsyncadd [#allocation19], %s128
      %s130 = sshll.u32 [#allocation18], 4
      %s131 = int_to_ptr.vmem [resolvable:$true] %s130
      %136 = dma.hbm_to_vmem [thread:$0]  %s9, 256, %s131, [#allocation19], 64, 64, 4
    $region41: #{tgcn_cell_apply.1} parent=1 // pred_fallthru
      _
    // Predicated region
    $region42: #{tgcn_cell_apply.1} parent=1 // pred_check
      _
    $region43: #{tgcn_cell_apply.1} parent=1 // pred_check_branch
      %138 = sbr.rel (0) target = $region45
    $region44: #{tgcn_cell_apply.1} parent=1 // pred_region
      %s140 = ssub.s32 16, 16
      %141 = vsyncadd [#allocation19], %s140
      %s143 = sshll.u32 [#allocation20], 4
      %s144 = int_to_ptr.vmem [resolvable:$true] %s143
      %146 = dma.hbm_to_vmem [thread:$0]  %s10, 16, %s144, [#allocation19]
    $region45: #{tgcn_cell_apply.1} parent=1 // pred_fallthru
      _
    // Predicated region
    $region46: #{tgcn_cell_apply.1} parent=1 // pred_check
      _
    $region47: #{tgcn_cell_apply.1} parent=1 // pred_check_branch
      %148 = sbr.rel (0) target = $region49
    $region48: #{tgcn_cell_apply.1} parent=1 // pred_region
      %149 = dma.done [#allocation4], 256
    $region49: #{tgcn_cell_apply.1} parent=1 // pred_fallthru
      _
    // Predicated region
    $region50: #{tgcn_cell_apply.1} parent=1 // pred_check
      _
    $region51: #{tgcn_cell_apply.1} parent=1 // pred_check_branch
      %151 = sbr.rel (0) target = $region53
    $region52: #{tgcn_cell_apply.1} parent=1 // pred_region
      %152 = dma.done [#allocation7], 512
    $region53: #{tgcn_cell_apply.1} parent=1 // pred_fallthru
      _
    // Predicated region
    $region54: #{tgcn_cell_apply.1} parent=1 // pred_check
      _
    $region55: #{tgcn_cell_apply.1} parent=1 // pred_check_branch
      %154 = sbr.rel (0) target = $region57
    $region56: #{tgcn_cell_apply.1} parent=1 // pred_region
      %155 = dma.done [#allocation7], 256
    $region57: #{tgcn_cell_apply.1} parent=1 // pred_fallthru
      _
    // Predicated region
    $region58: #{tgcn_cell_apply.1} parent=1 // pred_check
      _
    $region59: #{tgcn_cell_apply.1} parent=1 // pred_check_branch
      %157 = sbr.rel (0) target = $region61
    $region60: #{tgcn_cell_apply.1} parent=1 // pred_region
      %158 = dma.done [#allocation10], 128
    $region61: #{tgcn_cell_apply.1} parent=1 // pred_fallthru
      _
    // Predicated region
    $region62: #{tgcn_cell_apply.1} parent=1 // pred_check
      _
    $region63: #{tgcn_cell_apply.1} parent=1 // pred_check_branch
      %160 = sbr.rel (0) target = $region65
    $region64: #{tgcn_cell_apply.1} parent=1 // pred_region
      %161 = dma.done [#allocation10], 256
    $region65: #{tgcn_cell_apply.1} parent=1 // pred_fallthru
      _
    // Predicated region
    $region66: #{tgcn_cell_apply.1} parent=1 // pred_check
      _
    $region67: #{tgcn_cell_apply.1} parent=1 // pred_check_branch
      %163 = sbr.rel (0) target = $region69
    $region68: #{tgcn_cell_apply.1} parent=1 // pred_region
      %164 = dma.done [#allocation13], 16
    $region69: #{tgcn_cell_apply.1} parent=1 // pred_fallthru
      _
    // Predicated region
    $region70: #{tgcn_cell_apply.1} parent=1 // pred_check
      _
    $region71: #{tgcn_cell_apply.1} parent=1 // pred_check_branch
      %166 = sbr.rel (0) target = $region73
    $region72: #{tgcn_cell_apply.1} parent=1 // pred_region
      %167 = dma.done [#allocation13], 256
    $region73: #{tgcn_cell_apply.1} parent=1 // pred_fallthru
      _
    // Predicated region
    $region74: #{tgcn_cell_apply.1} parent=1 // pred_check
      _
    $region75: #{tgcn_cell_apply.1} parent=1 // pred_check_branch
      %169 = sbr.rel (0) target = $region77
    $region76: #{tgcn_cell_apply.1} parent=1 // pred_region
      %170 = dma.done [#allocation16], 16
    $region77: #{tgcn_cell_apply.1} parent=1 // pred_fallthru
      _
    // Predicated region
    $region78: #{tgcn_cell_apply.1} parent=1 // pred_check
      _
    $region79: #{tgcn_cell_apply.1} parent=1 // pred_check_branch
      %172 = sbr.rel (0) target = $region81
    $region80: #{tgcn_cell_apply.1} parent=1 // pred_region
      %173 = dma.done [#allocation16], 16
    $region81: #{tgcn_cell_apply.1} parent=1 // pred_fallthru
      _
    // Predicated region
    $region82: #{tgcn_cell_apply.1} parent=1 // pred_check
      _
    $region83: #{tgcn_cell_apply.1} parent=1 // pred_check_branch
      %175 = sbr.rel (0) target = $region85
    $region84: #{tgcn_cell_apply.1} parent=1 // pred_region
      %176 = dma.done [#allocation19], 256
    $region85: #{tgcn_cell_apply.1} parent=1 // pred_fallthru
      _
    // Predicated region
    $region86: #{tgcn_cell_apply.1} parent=1 // pred_check
      _
    $region87: #{tgcn_cell_apply.1} parent=1 // pred_check_branch
      %178 = sbr.rel (0) target = $region89
    $region88: #{tgcn_cell_apply.1} parent=1 // pred_region
      %179 = dma.done [#allocation19], 16
    $region89: #{tgcn_cell_apply.1} parent=1 // pred_fallthru
      _
    %v181 = vld [vmem:[#allocation3] sm:$0xff]
    %v182 = vld [vmem:[#allocation3 + $0x8] sm:$0xff]
    %v183 = vld [vmem:[#allocation9] sm:$0xf]
    %v184 = vld [vmem:[#allocation9 + $0x4] sm:$0xf]
    %v185 = vpack.c.bf16 %v182, %v181
    %v188 = vunpack.c.l.b16 %v183
    %v189 = vunpack.c.l.b16 %v184
    %v190 = vpack.c.b16 %v189, %v188
    %vm191 = vcmask 130048
    %v193 = vsel %vm191, %v190, 0
    %195 = vmatprep.subr.bf16.mxu0 0
    %196 = vmatpush1.bf16.msra.mxu0 %v185
    %197 = vmatprep.subr.bf16.mxu0 0
    %198 = vmatpush1.bf16.msra.mxu0 0
    %199 = vmatprep.subr.bf16.mxu0 0
    %200 = vmatpush1.bf16.msra.mxu0 0
    %201 = vmatprep.subr.bf16.mxu0 0
    %202 = vmatpush1.bf16.msra.mxu0 0
    %203 = vmatprep.subr.bf16.mxu0 0
    %204 = vmatpush1.bf16.msra.mxu0 0
    %205 = vmatprep.subr.bf16.mxu0 0
    %206 = vmatpush1.bf16.msra.mxu0 0
    %207 = vmatprep.subr.bf16.mxu0 0
    %208 = vmatpush1.bf16.msra.mxu0 0
    %209 = vmatprep.subr.bf16.mxu0 0
    %210 = vmatpush1.bf16.msra.mxu0 0
    %211 = vmatprep.subr.bf16.mxu0 0
    %212 = vmatpush1.bf16.msra.mxu0 0
    %213 = vmatprep.subr.bf16.mxu0 0
    %214 = vmatpush1.bf16.msra.mxu0 0
    %215 = vmatprep.subr.bf16.mxu0 0
    %216 = vmatpush1.bf16.msra.mxu0 0
    %217 = vmatprep.subr.bf16.mxu0 0
    %218 = vmatpush1.bf16.msra.mxu0 0
    %219 = vmatprep.subr.bf16.mxu0 0
    %220 = vmatpush1.bf16.msra.mxu0 0
    %221 = vmatprep.subr.bf16.mxu0 0
    %222 = vmatpush1.bf16.msra.mxu0 0
    %223 = vmatprep.subr.bf16.mxu0 0
    %224 = vmatpush1.bf16.msra.mxu0 0
    %225 = vmatprep.subr.bf16.mxu0 0
    %226 = vmatpush1.bf16.msra.mxu0 0
    %227 = vmatprep.mubr.bf16.mxu0 0
    %228 = vmatmul.mubr.bf16.gmra.mrb[0].mxu0 %v193
    %v229 = vpop.f32.mrb[0].mxu0
    %v230 = vadd.f32 0.0, %v229
    %v231 = vpop.f32.mrb[0].mxu0
    %v232 = vpop.f32.mrb[0].mxu0
    %v233 = vadd.f32 0.0, %v232
    %v234 = vpop.f32.mrb[0].mxu0
    %235 = vdwg.mxu0
    %v236 = vld [vmem:[#allocation11] sm:$0xff]
    %v237 = vld [vmem:[#allocation11 + $0x8] sm:$0xff]
    %239 = vset.pattern.permute.xlu0 0
    %240 = vperm.xlu0 %239, %v236
    %v241 = vpop.permute.xlu0 %240
    %244 = vset.pattern.permute.xlu0 0
    %245 = vperm.xlu0 %244, %v237
    %v246 = vpop.permute.xlu0 %245
    %v248 = vmul.f32 %v241, %v181
    %v249 = vmul.f32 %v246, %v182
    %v250 = vadd.f32 %v230, %v248
    %v251 = vadd.f32 %v233, %v249
    %vm252 = vcmask 15360
    %253 = vst.msk [vmem:[#allocation2] sm:$0xff] %vm252, %v250
    %254 = vst.msk [vmem:[#allocation2 + $0x8] sm:$0xff] %vm252, %v251
    %v255 = vld [vmem:[#allocation2] ss:$2 sm:$0xff]
    %s256 = scalar_lea.vmem [#allocation2], 1
    %v257 = vld [vmem:[%s256] ss:$2 sm:$0xff]
    %v258 = vld [vmem:[#allocation12] sm:$0x1]
    %v259 = vld [vmem:[#allocation14] sm:$0xf]
    %v260 = vld [vmem:[#allocation14 + $0x4] sm:$0xf]
    %v261 = vld [vmem:[#allocation14 + $0x8] sm:$0xf]
    %v262 = vld [vmem:[#allocation14 + $0xc] sm:$0xf]
    %v263 = vld [vmem:[#allocation15] sm:$0x1]
    %v264 = vld [vmem:[#allocation17] sm:$0x1]
    %v265 = vld [vmem:[#allocation18] sm:$0xf]
    %v266 = vld [vmem:[#allocation18 + $0x4] sm:$0xf]
    %v267 = vld [vmem:[#allocation18 + $0x8] sm:$0xf]
    %v268 = vld [vmem:[#allocation18 + $0xc] sm:$0xf]
    %v269 = vld [vmem:[#allocation20] sm:$0x1]
    %v270 = vld [vmem:[#allocation6] sm:$0xff]
    %v271 = vld [vmem:[#allocation6 + $0x8] sm:$0xff]
    %v272 = vld [vmem:[#allocation8] sm:$0xff]
    %274 = vset.pattern.permute.xlu0 0
    %275 = vperm.xlu0 %274, %v230
    %v276 = vpop.permute.xlu0 %275
    %279 = vset.pattern.permute.xlu0 0
    %280 = vperm.xlu0 %279, %v233
    %v281 = vpop.permute.xlu0 %280
    %v284 = vlaneseq
    %v285 = vshrl.u32 %v284, 7
    %v286 = vsub.s32 0, %v285
    %v287 = vrot.slane %v258, %v286
    %v289 = vmul.f32 %v276, %v287
    %v290 = vmul.f32 %v281, %v287
    %v291 = vpack.c.bf16 %v271, %v270
    %v296 = vunpack.c.l.b16 %v259
    %v297 = vunpack.c.l.b16 %v260
    %v298 = vunpack.c.l.b16 %v261
    %v299 = vunpack.c.l.b16 %v262
    %v300 = vpack.c.b16 %v297, %v296
    %v301 = vpack.c.b16 %v299, %v298
    %vm304 = vcmask 261120
    %v306 = vsel %vm304, %v291, 0
    %308 = vmatprep.subr.bf16.mxu0 0
    %309 = vmatpush1.bf16.msra.mxu0 %v300
    %310 = vmatprep.subr.bf16.mxu0 0
    %311 = vmatpush1.bf16.msra.mxu0 %v301
    %312 = vmatprep.subr.bf16.mxu0 0
    %313 = vmatpush1.bf16.msra.mxu0 0
    %314 = vmatprep.subr.bf16.mxu0 0
    %315 = vmatpush1.bf16.msra.mxu0 0
    %316 = vmatprep.subr.bf16.mxu0 0
    %317 = vmatpush1.bf16.msra.mxu0 0
    %318 = vmatprep.subr.bf16.mxu0 0
    %319 = vmatpush1.bf16.msra.mxu0 0
    %320 = vmatprep.subr.bf16.mxu0 0
    %321 = vmatpush1.bf16.msra.mxu0 0
    %322 = vmatprep.subr.bf16.mxu0 0
    %323 = vmatpush1.bf16.msra.mxu0 0
    %324 = vmatprep.subr.bf16.mxu0 0
    %325 = vmatpush1.bf16.msra.mxu0 0
    %326 = vmatprep.subr.bf16.mxu0 0
    %327 = vmatpush1.bf16.msra.mxu0 0
    %328 = vmatprep.subr.bf16.mxu0 0
    %329 = vmatpush1.bf16.msra.mxu0 0
    %330 = vmatprep.subr.bf16.mxu0 0
    %331 = vmatpush1.bf16.msra.mxu0 0
    %332 = vmatprep.subr.bf16.mxu0 0
    %333 = vmatpush1.bf16.msra.mxu0 0
    %334 = vmatprep.subr.bf16.mxu0 0
    %335 = vmatpush1.bf16.msra.mxu0 0
    %336 = vmatprep.subr.bf16.mxu0 0
    %337 = vmatpush1.bf16.msra.mxu0 0
    %338 = vmatprep.subr.bf16.mxu0 0
    %339 = vmatpush1.bf16.msra.mxu0 0
    %340 = vmatprep.mubr.bf16.mxu0 0
    %341 = vmatmul.mubr.bf16.gmra.mrb[0].mxu0 %v306
    %v342 = vpop.f32.mrb[0].mxu0
    %v343 = vadd.f32 0.0, %v342
    %v344 = vpop.f32.mrb[0].mxu0
    %v345 = vpop.f32.mrb[0].mxu0
    %v346 = vadd.f32 0.0, %v345
    %v347 = vpop.f32.mrb[0].mxu0
    %348 = vdwg.mxu0
    %v349 = vadd.f32 %v289, %v343
    %v350 = vadd.f32 %v290, %v346
    %v352 = vlaneseq
    %v353 = vshrl.u32 %v352, 7
    %v354 = vsub.s32 0, %v353
    %v355 = vrot.slane %v263, %v354
    %v357 = vadd.f32 %v349, %v355
    %v358 = vadd.f32 %v350, %v355
    %v359 = vxor.u32 %v357, 2147483648
    %v360 = vxor.u32 %v358, 2147483648
    %v361 = vmul.f32 %v359, 1.442695
    %v362 = vpow.pop %v361
    %v363 = vmul.f32 %v360, 1.442695
    %v364 = vpow.pop %v363
    %v365 = vadd.f32 %v362, 1.0
    %v366 = vadd.f32 %v364, 1.0
    %v367 = vrcp.pop %v365
    %v368 = vmul.f32 1.0, %v367
    %v369 = vrcp.pop %v366
    %v370 = vmul.f32 1.0, %v369
    %v371 = vmul.f32 %v368, %v272
    %v372 = vpack.c.bf16 %v371, %v371
    %v377 = vunpack.c.l.b16 %v265
    %v378 = vunpack.c.l.b16 %v266
    %v379 = vunpack.c.l.b16 %v267
    %v380 = vunpack.c.l.b16 %v268
    %v381 = vpack.c.b16 %v378, %v377
    %v382 = vpack.c.b16 %v380, %v379
    %v386 = vsel %vm304, %v372, 0
    %388 = vmatprep.subr.bf16.mxu0 0
    %389 = vmatpush1.bf16.msra.mxu0 %v381
    %390 = vmatprep.subr.bf16.mxu0 0
    %391 = vmatpush1.bf16.msra.mxu0 %v382
    %392 = vmatprep.subr.bf16.mxu0 0
    %393 = vmatpush1.bf16.msra.mxu0 0
    %394 = vmatprep.subr.bf16.mxu0 0
    %395 = vmatpush1.bf16.msra.mxu0 0
    %396 = vmatprep.subr.bf16.mxu0 0
    %397 = vmatpush1.bf16.msra.mxu0 0
    %398 = vmatprep.subr.bf16.mxu0 0
    %399 = vmatpush1.bf16.msra.mxu0 0
    %400 = vmatprep.subr.bf16.mxu0 0
    %401 = vmatpush1.bf16.msra.mxu0 0
    %402 = vmatprep.subr.bf16.mxu0 0
    %403 = vmatpush1.bf16.msra.mxu0 0
    %404 = vmatprep.subr.bf16.mxu0 0
    %405 = vmatpush1.bf16.msra.mxu0 0
    %406 = vmatprep.subr.bf16.mxu0 0
    %407 = vmatpush1.bf16.msra.mxu0 0
    %408 = vmatprep.subr.bf16.mxu0 0
    %409 = vmatpush1.bf16.msra.mxu0 0
    %410 = vmatprep.subr.bf16.mxu0 0
    %411 = vmatpush1.bf16.msra.mxu0 0
    %412 = vmatprep.subr.bf16.mxu0 0
    %413 = vmatpush1.bf16.msra.mxu0 0
    %414 = vmatprep.subr.bf16.mxu0 0
    %415 = vmatpush1.bf16.msra.mxu0 0
    %416 = vmatprep.subr.bf16.mxu0 0
    %417 = vmatpush1.bf16.msra.mxu0 0
    %418 = vmatprep.subr.bf16.mxu0 0
    %419 = vmatpush1.bf16.msra.mxu0 0
    %420 = vmatprep.mubr.bf16.mxu0 0
    %421 = vmatmul.mubr.bf16.gmra.mrb[0].mxu0 %v386
    %v422 = vpop.f32.mrb[0].mxu0
    %v423 = vadd.f32 0.0, %v422
    %v424 = vpop.f32.mrb[0].mxu0
    %v425 = vpop.f32.mrb[0].mxu0
    %v426 = vpop.f32.mrb[0].mxu0
    %427 = vdwg.mxu0
    %429 = vrot.lane.b32.xlu0 %v372, 96
    %v430 = vpop.permute.xlu0 %429
    %v432 = vsel %vm304, %v430, 0
    %434 = vmatprep.subr.bf16.mxu0 0
    %435 = vmatpush1.bf16.msra.mxu0 %v381
    %436 = vmatprep.subr.bf16.mxu0 0
    %437 = vmatpush1.bf16.msra.mxu0 %v382
    %438 = vmatprep.subr.bf16.mxu0 0
    %439 = vmatpush1.bf16.msra.mxu0 0
    %440 = vmatprep.subr.bf16.mxu0 0
    %441 = vmatpush1.bf16.msra.mxu0 0
    %442 = vmatprep.subr.bf16.mxu0 0
    %443 = vmatpush1.bf16.msra.mxu0 0
    %444 = vmatprep.subr.bf16.mxu0 0
    %445 = vmatpush1.bf16.msra.mxu0 0
    %446 = vmatprep.subr.bf16.mxu0 0
    %447 = vmatpush1.bf16.msra.mxu0 0
    %448 = vmatprep.subr.bf16.mxu0 0
    %449 = vmatpush1.bf16.msra.mxu0 0
    %450 = vmatprep.subr.bf16.mxu0 0
    %451 = vmatpush1.bf16.msra.mxu0 0
    %452 = vmatprep.subr.bf16.mxu0 0
    %453 = vmatpush1.bf16.msra.mxu0 0
    %454 = vmatprep.subr.bf16.mxu0 0
    %455 = vmatpush1.bf16.msra.mxu0 0
    %456 = vmatprep.subr.bf16.mxu0 0
    %457 = vmatpush1.bf16.msra.mxu0 0
    %458 = vmatprep.subr.bf16.mxu0 0
    %459 = vmatpush1.bf16.msra.mxu0 0
    %460 = vmatprep.subr.bf16.mxu0 0
    %461 = vmatpush1.bf16.msra.mxu0 0
    %462 = vmatprep.subr.bf16.mxu0 0
    %463 = vmatpush1.bf16.msra.mxu0 0
    %464 = vmatprep.subr.bf16.mxu0 0
    %465 = vmatpush1.bf16.msra.mxu0 0
    %466 = vmatprep.mubr.bf16.mxu0 0
    %467 = vmatmul.mubr.bf16.gmra.mrb[0].mxu0 %v432
    %v468 = vpop.f32.mrb[0].mxu0
    %v469 = vadd.f32 0.0, %v468
    %v470 = vpop.f32.mrb[0].mxu0
    %v471 = vpop.f32.mrb[0].mxu0
    %v472 = vpop.f32.mrb[0].mxu0
    %473 = vdwg.mxu0
    %475 = vset.pattern.permute.xlu0 0
    %476 = vperm.xlu0 %475, %v255
    %v477 = vpop.permute.xlu0 %476
    %v480 = vlaneseq
    %v481 = vshrl.u32 %v480, 7
    %v482 = vsub.s32 0, %v481
    %v483 = vrot.slane %v264, %v482
    %v485 = vmul.f32 %v477, %v483
    %v486 = vadd.f32 %v485, %v423
    %v488 = vlaneseq
    %v489 = vshrl.u32 %v488, 7
    %v490 = vsub.s32 0, %v489
    %v491 = vrot.slane %v269, %v490
    %v493 = vadd.f32 %v486, %v491
    %495 = vset.pattern.permute.xlu0 0
    %496 = vperm.xlu0 %495, %v257
    %v497 = vpop.permute.xlu0 %496
    %v499 = vmul.f32 %v497, %v483
    %v500 = vadd.f32 %v499, %v469
    %v501 = vadd.f32 %v500, %v491
    %503 = vrot.lane.b32.xlu0 %v501, 32
    %v504 = vpop.permute.xlu0 %503
    %v506 = vsel %vm304, %v493, %v504
    %v507 = vtanh.pop %v506
    %v508 = vmul.f32 %v370, %v272
    %v509 = vsub.f32 1.0, %v370
    %v510 = vmul.f32 %v509, %v507
    %v511 = vadd.f32 %v508, %v510
    %vm512 = vcmask 523264
    %513 = vst.msk [vmem:[#allocation21] sm:$0xff] %vm512, %v511
    %s514 = scalar_lea.vmem [#allocation6], 16
    %v515 = vld [vmem:[%s514] sm:$0xff]
    %v516 = vld [vmem:[%s514 + $0x8] sm:$0xff]
    %s517 = scalar_lea.vmem [#allocation8], 8
    %v518 = vld [vmem:[%s517] sm:$0xff]
    %519 = vset.pattern.permute.xlu0 1
    %520 = vperm.xlu0 %519, %v230
    %v521 = vpop.permute.xlu0 %520
    %523 = vset.pattern.permute.xlu0 1
    %524 = vperm.xlu0 %523, %v233
    %v525 = vpop.permute.xlu0 %524
    %v527 = vmul.f32 %v521, %v287
    %v528 = vmul.f32 %v525, %v287
    %v529 = vpack.c.bf16 %v516, %v515
    %v531 = vsel %vm304, %v529, 0
    %533 = vmatprep.subr.bf16.mxu0 0
    %534 = vmatpush1.bf16.msra.mxu0 %v300
    %535 = vmatprep.subr.bf16.mxu0 0
    %536 = vmatpush1.bf16.msra.mxu0 %v301
    %537 = vmatprep.subr.bf16.mxu0 0
    %538 = vmatpush1.bf16.msra.mxu0 0
    %539 = vmatprep.subr.bf16.mxu0 0
    %540 = vmatpush1.bf16.msra.mxu0 0
    %541 = vmatprep.subr.bf16.mxu0 0
    %542 = vmatpush1.bf16.msra.mxu0 0
    %543 = vmatprep.subr.bf16.mxu0 0
    %544 = vmatpush1.bf16.msra.mxu0 0
    %545 = vmatprep.subr.bf16.mxu0 0
    %546 = vmatpush1.bf16.msra.mxu0 0
    %547 = vmatprep.subr.bf16.mxu0 0
    %548 = vmatpush1.bf16.msra.mxu0 0
    %549 = vmatprep.subr.bf16.mxu0 0
    %550 = vmatpush1.bf16.msra.mxu0 0
    %551 = vmatprep.subr.bf16.mxu0 0
    %552 = vmatpush1.bf16.msra.mxu0 0
    %553 = vmatprep.subr.bf16.mxu0 0
    %554 = vmatpush1.bf16.msra.mxu0 0
    %555 = vmatprep.subr.bf16.mxu0 0
    %556 = vmatpush1.bf16.msra.mxu0 0
    %557 = vmatprep.subr.bf16.mxu0 0
    %558 = vmatpush1.bf16.msra.mxu0 0
    %559 = vmatprep.subr.bf16.mxu0 0
    %560 = vmatpush1.bf16.msra.mxu0 0
    %561 = vmatprep.subr.bf16.mxu0 0
    %562 = vmatpush1.bf16.msra.mxu0 0
    %563 = vmatprep.subr.bf16.mxu0 0
    %564 = vmatpush1.bf16.msra.mxu0 0
    %565 = vmatprep.mubr.bf16.mxu0 0
    %566 = vmatmul.mubr.bf16.gmra.mrb[0].mxu0 %v531
    %v567 = vpop.f32.mrb[0].mxu0
    %v568 = vadd.f32 0.0, %v567
    %v569 = vpop.f32.mrb[0].mxu0
    %v570 = vpop.f32.mrb[0].mxu0
    %v571 = vadd.f32 0.0, %v570
    %v572 = vpop.f32.mrb[0].mxu0
    %573 = vdwg.mxu0
    %v574 = vadd.f32 %v527, %v568
    %v575 = vadd.f32 %v528, %v571
    %v576 = vadd.f32 %v574, %v355
    %v577 = vadd.f32 %v575, %v355
    %v578 = vxor.u32 %v576, 2147483648
    %v579 = vxor.u32 %v577, 2147483648
    %v580 = vmul.f32 %v578, 1.442695
    %v581 = vpow.pop %v580
    %v582 = vmul.f32 %v579, 1.442695
    %v583 = vpow.pop %v582
    %v584 = vadd.f32 %v581, 1.0
    %v585 = vadd.f32 %v583, 1.0
    %v586 = vrcp.pop %v584
    %v587 = vmul.f32 1.0, %v586
    %v588 = vrcp.pop %v585
    %v589 = vmul.f32 1.0, %v588
    %v590 = vmul.f32 %v587, %v518
    %v591 = vpack.c.bf16 %v590, %v590
    %v593 = vsel %vm304, %v591, 0
    %595 = vmatprep.subr.bf16.mxu0 0
    %596 = vmatpush1.bf16.msra.mxu0 %v381
    %597 = vmatprep.subr.bf16.mxu0 0
    %598 = vmatpush1.bf16.msra.mxu0 %v382
    %599 = vmatprep.subr.bf16.mxu0 0
    %600 = vmatpush1.bf16.msra.mxu0 0
    %601 = vmatprep.subr.bf16.mxu0 0
    %602 = vmatpush1.bf16.msra.mxu0 0
    %603 = vmatprep.subr.bf16.mxu0 0
    %604 = vmatpush1.bf16.msra.mxu0 0
    %605 = vmatprep.subr.bf16.mxu0 0
    %606 = vmatpush1.bf16.msra.mxu0 0
    %607 = vmatprep.subr.bf16.mxu0 0
    %608 = vmatpush1.bf16.msra.mxu0 0
    %609 = vmatprep.subr.bf16.mxu0 0
    %610 = vmatpush1.bf16.msra.mxu0 0
    %611 = vmatprep.subr.bf16.mxu0 0
    %612 = vmatpush1.bf16.msra.mxu0 0
    %613 = vmatprep.subr.bf16.mxu0 0
    %614 = vmatpush1.bf16.msra.mxu0 0
    %615 = vmatprep.subr.bf16.mxu0 0
    %616 = vmatpush1.bf16.msra.mxu0 0
    %617 = vmatprep.subr.bf16.mxu0 0
    %618 = vmatpush1.bf16.msra.mxu0 0
    %619 = vmatprep.subr.bf16.mxu0 0
    %620 = vmatpush1.bf16.msra.mxu0 0
    %621 = vmatprep.subr.bf16.mxu0 0
    %622 = vmatpush1.bf16.msra.mxu0 0
    %623 = vmatprep.subr.bf16.mxu0 0
    %624 = vmatpush1.bf16.msra.mxu0 0
    %625 = vmatprep.subr.bf16.mxu0 0
    %626 = vmatpush1.bf16.msra.mxu0 0
    %627 = vmatprep.mubr.bf16.mxu0 0
    %628 = vmatmul.mubr.bf16.gmra.mrb[0].mxu0 %v593
    %v629 = vpop.f32.mrb[0].mxu0
    %v630 = vadd.f32 0.0, %v629
    %v631 = vpop.f32.mrb[0].mxu0
    %v632 = vpop.f32.mrb[0].mxu0
    %v633 = vpop.f32.mrb[0].mxu0
    %634 = vdwg.mxu0
    %636 = vrot.lane.b32.xlu0 %v591, 96
    %v637 = vpop.permute.xlu0 %636
    %v639 = vsel %vm304, %v637, 0
    %641 = vmatprep.subr.bf16.mxu0 0
    %642 = vmatpush1.bf16.msra.mxu0 %v381
    %643 = vmatprep.subr.bf16.mxu0 0
    %644 = vmatpush1.bf16.msra.mxu0 %v382
    %645 = vmatprep.subr.bf16.mxu0 0
    %646 = vmatpush1.bf16.msra.mxu0 0
    %647 = vmatprep.subr.bf16.mxu0 0
    %648 = vmatpush1.bf16.msra.mxu0 0
    %649 = vmatprep.subr.bf16.mxu0 0
    %650 = vmatpush1.bf16.msra.mxu0 0
    %651 = vmatprep.subr.bf16.mxu0 0
    %652 = vmatpush1.bf16.msra.mxu0 0
    %653 = vmatprep.subr.bf16.mxu0 0
    %654 = vmatpush1.bf16.msra.mxu0 0
    %655 = vmatprep.subr.bf16.mxu0 0
    %656 = vmatpush1.bf16.msra.mxu0 0
    %657 = vmatprep.subr.bf16.mxu0 0
    %658 = vmatpush1.bf16.msra.mxu0 0
    %659 = vmatprep.subr.bf16.mxu0 0
    %660 = vmatpush1.bf16.msra.mxu0 0
    %661 = vmatprep.subr.bf16.mxu0 0
    %662 = vmatpush1.bf16.msra.mxu0 0
    %663 = vmatprep.subr.bf16.mxu0 0
    %664 = vmatpush1.bf16.msra.mxu0 0
    %665 = vmatprep.subr.bf16.mxu0 0
    %666 = vmatpush1.bf16.msra.mxu0 0
    %667 = vmatprep.subr.bf16.mxu0 0
    %668 = vmatpush1.bf16.msra.mxu0 0
    %669 = vmatprep.subr.bf16.mxu0 0
    %670 = vmatpush1.bf16.msra.mxu0 0
    %671 = vmatprep.subr.bf16.mxu0 0
    %672 = vmatpush1.bf16.msra.mxu0 0
    %673 = vmatprep.mubr.bf16.mxu0 0
    %674 = vmatmul.mubr.bf16.gmra.mrb[0].mxu0 %v639
    %v675 = vpop.f32.mrb[0].mxu0
    %v676 = vadd.f32 0.0, %v675
    %v677 = vpop.f32.mrb[0].mxu0
    %v678 = vpop.f32.mrb[0].mxu0
    %v679 = vpop.f32.mrb[0].mxu0
    %680 = vdwg.mxu0
    %681 = vset.pattern.permute.xlu0 1
    %682 = vperm.xlu0 %681, %v255
    %v683 = vpop.permute.xlu0 %682
    %v685 = vmul.f32 %v683, %v483
    %v686 = vadd.f32 %v685, %v630
    %v687 = vadd.f32 %v686, %v491
    %688 = vset.pattern.permute.xlu0 1
    %689 = vperm.xlu0 %688, %v257
    %v690 = vpop.permute.xlu0 %689
    %v692 = vmul.f32 %v690, %v483
    %v693 = vadd.f32 %v692, %v676
    %v694 = vadd.f32 %v693, %v491
    %696 = vrot.lane.b32.xlu0 %v694, 32
    %v697 = vpop.permute.xlu0 %696
    %v699 = vsel %vm304, %v687, %v697
    %v700 = vtanh.pop %v699
    %v701 = vmul.f32 %v589, %v518
    %v702 = vsub.f32 1.0, %v589
    %v703 = vmul.f32 %v702, %v700
    %v704 = vadd.f32 %v701, %v703
    %s705 = scalar_lea.vmem [#allocation21], 8
    %706 = vst.msk [vmem:[%s705] sm:$0xff] %vm512, %v704
    // Predicated region
    $region90: #{tgcn_cell_apply.1} parent=1 // pred_check
      _
    $region91: #{tgcn_cell_apply.1} parent=1 // pred_check_branch
      %708 = sbr.rel (0) target = $region93
    $region92: #{tgcn_cell_apply.1} parent=1 // pred_region
      %s710 = ssub.s32 256, 256
      %711 = vsyncadd [#allocation5], %s710
      %s712 = sshll.u32 [#allocation21], 4
      %s713 = int_to_ptr.vmem [resolvable:$true] %s712
      %718 = dma.vmem_to_hbm [thread:$0]  %s713, 256, %s11, [#allocation5], 128, 128, 8
    $region93: #{tgcn_cell_apply.1} parent=1 // pred_fallthru
      _
    // Predicated region
    $region94: #{tgcn_cell_apply.1} parent=1 // pred_check
      _
    $region95: #{tgcn_cell_apply.1} parent=1 // pred_check_branch
      %720 = sbr.rel (0) target = $region97
    $region96: #{tgcn_cell_apply.1} parent=1 // pred_region
      %721 = dma.done [#allocation5], 256
    $region97: #{tgcn_cell_apply.1} parent=1 // pred_fallthru
      _
    %722 = vsyncpa [#allocation4], 1
    %723 = vsyncpa [#allocation7], 1
    %724 = vsyncpa [#allocation10], 1
    %725 = vsyncpa [#allocation13], 1
    %726 = vsyncpa [#allocation16], 1
    %727 = vsyncpa [#allocation19], 1
    %728 = vsyncpa [#allocation5], 1

</llo_original>
